<compile_context>
chip_gen: v6e
topology: v6e:2x2x1
jax: 0.10.0
libtpu: 0.0.40
codegen_flags: <defaults>
</compile_context>

<pallas_src>
import jax
import jax.numpy as jnp
import numpy as np
from jax.experimental import pallas as pl
from jax.experimental.pallas import tpu as pltpu


def _round_up(x, m):
    return (x + m - 1) // m * m


def _cdiv(a, b):
    return -(-a // b)


def _proj_matmul_kernel(p_ref, w_ref, b_ref, o_ref):
    # p_ref: (TM, Kp) patches tile (compute dtype)
    # w_ref: (Kp, TE) flattened conv weight tile (compute dtype)
    # b_ref: (1, TE)  f32 bias tile
    # o_ref: (TM, TE) output tile
    acc = jnp.dot(p_ref[...], w_ref[...], preferred_element_type=jnp.float32)
    o_ref[...] = (acc + b_ref[...]).astype(o_ref.dtype)


def _im2col(x, kh, kw, stride, padding):
    """(B, C, H, W) -> patches (B*Hp*Wp, C*kh*kw), feature order (C, kh, kw)."""
    B, C, H, W = x.shape
    xp = jnp.pad(x, ((0, 0), (0, 0), (padding, padding), (padding, padding)))
    Hpad, Wpad = H + 2 * padding, W + 2 * padding
    Hp = (Hpad - kh) // stride + 1
    Wp = (Wpad - kw) // stride + 1

    if stride == kh == kw and Hpad == Hp * kh and Wpad == Wp * kw:
        # ratio == 1 (non-overlapping windows): pure reshape + one transpose,
        # no data duplication.
        xr = xp.reshape(B, C, Hp, kh, Wp, kw)
        patches = xr.transpose(0, 2, 4, 1, 3, 5).reshape(B * Hp * Wp, C * kh * kw)
    else:
        # General overlapping-window fallback (ratio > 1).
        cols = []
        for i in range(kh):
            for j in range(kw):
                cols.append(
                    xp[:, :, i:i + stride * Hp:stride, j:j + stride * Wp:stride])
        patches = jnp.stack(cols, axis=2).reshape(B, C * kh * kw, Hp, Wp)
        patches = patches.transpose(0, 2, 3, 1).reshape(B * Hp * Wp, C * kh * kw)
    return patches, Hp, Wp


def prepare_proj_params(weight, bias, compute_dtype=jnp.bfloat16):
    """Hoistable per-model prep (weights are constant across forwards):
    flatten OIHW weight to (K, E), zero-pad K and E to multiples of 128,
    cast to the compute dtype; bias stays f32 for the in-kernel f32 add."""
    E, C, kh, kw = weight.shape
    K = C * kh * kw
    Kp = _round_up(K, 128)
    Ep = _round_up(E, 128)
    w2 = weight.reshape(E, K).T                                    # (K, E)
    w2 = jnp.pad(w2, ((0, Kp - K), (0, Ep - E))).astype(compute_dtype)
    b2 = jnp.pad(bias.astype(jnp.float32).reshape(1, E), ((0, 0), (0, Ep - E)))
    return w2, b2


# Per-step VMEM plan cap: comfortably below v7x's 64 MiB physical VMEM and
# raisable above v5e/v6e's default scoped limit via vmem_limit_bytes.
_VMEM_BUDGET = 36 * (1 << 20)


def patch_embed_forward(x, weight, bias, *, stride, padding,
                        compute_dtype=jnp.bfloat16, proj_params=None):
    """x: NCHW (B, C, H, W); weight: OIHW (E, C, kh, kw); bias: (E,).
    Returns ((B, Hp*Wp, E), (Hp, Wp)) matching PatchEmbed.forward."""
    B, C, H, W = x.shape
    E, _, kh, kw = weight.shape
    out_dtype = x.dtype

    if proj_params is None:
        if compute_dtype is None:
            compute_dtype = x.dtype
        proj_params = prepare_proj_params(weight, bias, compute_dtype)
    w2_p, b2_p = proj_params
    compute_dtype = w2_p.dtype
    Kp, Ep = w2_p.shape
    K = C * kh * kw

    # im2col in the compute dtype (halves its HBM pass when bf16).
    # TODO(synk): fuse im2col into the kernel (BlockSpec over the padded NCHW
    # input + in-VMEM rearrange) to avoid materializing the (M, K) patches
    # array in HBM; kept in XLA here for Mosaic-lowering robustness at small,
    # unaligned kh/kw.
    patches, Hp, Wp = _im2col(x.astype(compute_dtype), kh, kw, stride, padding)
    M = patches.shape[0]

    # ---- Tiling plan ---------------------------------------------------------
    cd = jnp.dtype(compute_dtype).itemsize
    od = jnp.dtype(out_dtype).itemsize
    row_align = 16 if cd == 2 else 8

    def footprint(tm, te):
        # Double-buffered patches + weight + output + bias tiles.
        return 2 * (tm * Kp * cd + Kp * te * cd + tm * te * od + te * 4)

    # Embed dim: prefer a single VMEM-resident weight block (TE == Ep), so the
    # weight/bias are DMA'd once; otherwise fall back to divisor tiles.
    te_cands = [Ep] + [t for t in (512, 256, 128) if t < Ep and Ep % t == 0]
    tm_target = min(512, _round_up(M, row_align))
    TE = te_cands[-1]
    for t in te_cands:
        if footprint(tm_target, t) <= _VMEM_BUDGET:
            TE = t
            break
    n_j = Ep // TE

    # Balanced row tiles (<= 512 rows each); keep the parallel i-axis even when
    # the j-axis collapses so v7x's 2 TensorCores get balanced halves.
    n_i = max(1, _cdiv(M, 512))
    if n_j == 1 and n_i > 1 and n_i % 2 == 1:
        n_i += 1
    TM = min(512, _round_up(_cdiv(M, n_i), row_align))
    while footprint(TM, TE) > _VMEM_BUDGET and TM > 2 * row_align:
        TM = _round_up(TM // 2, row_align)
    Mp = _round_up(M, TM)

    patches_p = patches
    if Mp != M or Kp != K:
        patches_p = jnp.pad(patches, ((0, Mp - M), (0, Kp - K)))

    vmem_limit = int(min(48 * (1 << 20),
                         max(footprint(TM, TE) + (2 << 20), 16 << 20)))

    grid = (Mp // TM, Ep // TE)
    out = pl.pallas_call(
        _proj_matmul_kernel,
        out_shape=jax.ShapeDtypeStruct((Mp, Ep), out_dtype),
        grid=grid,
        in_specs=[
            pl.BlockSpec((TM, Kp), lambda i, j: (i, 0)),   # streaming patch rows
            pl.BlockSpec((Kp, TE), lambda i, j: (0, j)),   # weight (resident if grid[1]==1)
            pl.BlockSpec((1, TE), lambda i, j: (0, j)),    # bias
        ],
        out_specs=pl.BlockSpec((TM, TE), lambda i, j: (i, j)),
        compiler_params=pltpu.CompilerParams(
            dimension_semantics=("parallel", "parallel"),
            vmem_limit_bytes=vmem_limit),
    )(patches_p, w2_p, b2_p)

    out = out[:M, :E].reshape(B, Hp * Wp, E)               # flatten(2).transpose(1,2)
    return out, (Hp, Wp)


if __name__ == "__main__":
    # Small config consistent with the module: ratio=1 ->
    # padding = 4 + 2*(1//2 - 1) = 2, stride = patch_size.
    B, C, H, W = 2, 4, 16, 16
    patch_size = 4
    embed_dim = 32
    ratio = 1
    stride = patch_size // ratio
    padding = 4 + 2 * (ratio // 2 - 1)                      # = 2 for ratio=1

    key = jax.random.PRNGKey(0)
    kx, kw_, kb = jax.random.split(key, 3)
    x = jax.random.normal(kx, (B, C, H, W), dtype=jnp.float32)
    fan_in = C * patch_size * patch_size
    weight = jax.random.normal(kw_, (embed_dim, C, patch_size, patch_size),
                               dtype=jnp.float32) * (1.0 / np.sqrt(fan_in))
    bias = jax.random.normal(kb, (embed_dim,), dtype=jnp.float32) * 0.02

    # Plain-JAX conv reference (PyTorch Conv2d + flatten + transpose semantics).
    ref = jax.lax.conv_general_dilated(
        x, weight, window_strides=(stride, stride),
        padding=((padding, padding), (padding, padding)),
        dimension_numbers=("NCHW", "OIHW", "NCHW"))
    ref = ref + bias[None, :, None, None]
    Hp_ref, Wp_ref = ref.shape[2], ref.shape[3]
    ref = ref.reshape(B, embed_dim, Hp_ref * Wp_ref).transpose(0, 2, 1)

    # Default path: bf16 compute, f32 accumulation (bf16-input rounding only,
    # so it no longer bit-matches the f32 conv; tolerance documents that).
    params_bf16 = prepare_proj_params(weight, bias, jnp.bfloat16)
    y, (Hp, Wp) = patch_embed_forward(x, weight, bias, stride=stride,
                                      padding=padding, proj_params=params_bf16)
    y = jax.block_until_ready(y)
    assert y.shape == (B, Hp * Wp, embed_dim), y.shape
    assert (Hp, Wp) == (Hp_ref, Wp_ref), (Hp, Wp, Hp_ref, Wp_ref)
    assert np.allclose(np.asarray(y), np.asarray(ref), atol=5e-2, rtol=5e-2)

    # Strict f32 compute path: tight parity with the conv reference.
    y32, _ = patch_embed_forward(x, weight, bias, stride=stride, padding=padding,
                                 compute_dtype=jnp.float32)
    y32 = jax.block_until_ready(y32)
    assert np.allclose(np.asarray(y32), np.asarray(ref), atol=1e-4, rtol=1e-4)

    print("KERNEL_OK")
</pallas_src>

<mosaic_0001>
module attributes {stable_mosaic.version = 11 : i64} {
  func.func @_proj_matmul_kernel(%arg0: i32, %arg1: i32, %arg2: memref<64x128xbf16, #tpu.memory_space<vmem>>, %arg3: memref<128x128xbf16, #tpu.memory_space<vmem>>, %arg4: memref<1x128xf32, #tpu.memory_space<vmem>>, %arg5: memref<64x128xf32, #tpu.memory_space<vmem>>) attributes {dimension_semantics = [#tpu.dimension_semantics<parallel>, #tpu.dimension_semantics<parallel>], iteration_bounds = array<i64: 1, 1>, scalar_prefetch = 0 : i64, scratch_operands = 0 : i64, tpu.core_type = #tpu.core_type<tc>, window_params = [{transform_indices = @transform_0, window_bounds = array<i64: 64, 128>}, {transform_indices = @transform_1, window_bounds = array<i64: 128, 128>}, {transform_indices = @transform_2, window_bounds = array<i64: 1, 128>}, {transform_indices = @transform_3, window_bounds = array<i64: 64, 128>}]} {
    %c0 = arith.constant 0 : index
    %c0_0 = arith.constant 0 : index
    %0 = vector.load %arg2[%c0, %c0_0] : memref<64x128xbf16, #tpu.memory_space<vmem>>, vector<64x128xbf16>
    %c0_1 = arith.constant 0 : index
    %c0_2 = arith.constant 0 : index
    %1 = vector.load %arg3[%c0_1, %c0_2] : memref<128x128xbf16, #tpu.memory_space<vmem>>, vector<128x128xbf16>
    %cst = arith.constant dense<0.000000e+00> : vector<64x128xf32>
    %2 = tpu.matmul %0, %1, %cst {dimension_numbers = #tpu.dot_dimension_numbers<[1], [0], [0], [1], [0, 0, 1, 1], [], []>} : vector<64x128xbf16>, vector<128x128xbf16>, vector<64x128xf32> -> vector<64x128xf32>
    %c0_3 = arith.constant 0 : index
    %c0_4 = arith.constant 0 : index
    %3 = vector.load %arg4[%c0_3, %c0_4] : memref<1x128xf32, #tpu.memory_space<vmem>>, vector<1x128xf32>
    %4 = vector.broadcast %3 : vector<1x128xf32> to vector<64x128xf32>
    %5 = arith.addf %2, %4 : vector<64x128xf32>
    %c0_5 = arith.constant 0 : index
    %c0_6 = arith.constant 0 : index
    %6 = vector.load %arg5[%c0_5, %c0_6] : memref<64x128xf32, #tpu.memory_space<vmem>>, vector<64x128xf32>
    tpu.vector_store %arg5[%c0_5, %c0_6], %5 {strides = array<i32>} : memref<64x128xf32, #tpu.memory_space<vmem>>, vector<64x128xf32>,
    return
  }
  func.func @transform_0(%arg0: i32, %arg1: i32) -> (i32, i32) {
    %c0_i32 = arith.constant 0 : i32
    %c0_i32_0 = arith.constant 0 : i32
    return %arg0, %c0_i32 : i32, i32
  }
  func.func @transform_1(%arg0: i32, %arg1: i32) -> (i32, i32) {
    %c0_i32 = arith.constant 0 : i32
    %c0_i32_0 = arith.constant 0 : i32
    return %c0_i32, %arg1 : i32, i32
  }
  func.func @transform_2(%arg0: i32, %arg1: i32) -> (i32, i32) {
    %c0_i32 = arith.constant 0 : i32
    %c0_i32_0 = arith.constant 0 : i32
    return %c0_i32, %arg1 : i32, i32
  }
  func.func @transform_3(%arg0: i32, %arg1: i32) -> (i32, i32) {
    %c0_i32 = arith.constant 0 : i32
    return %arg0, %arg1 : i32, i32
  }
}

</mosaic_0001>

<llo_original>
// kernel: tpu_custom_call.1
$region0: #{tpu_custom_call.1}
  #allocation0 [shape = 'u32[]', space=smem, size = 0x4, offset = 0x4, fixed_abs, tag = 'smem constant byte address 0x4 - core index']
  #allocation1 [shape = 'u32[144,128]{1,0:T(1,128)}', space=vmem, size = 0x12000, scoped, tag = 'internal scratch']
  %s0 = inlined_call_operand.hbm [shape: bf16[64,128], index: 0, kind: input, shape index: {}]
  %s1 = inlined_call_operand.hbm [shape: bf16[128,128], index: 1, kind: input, shape index: {}]
  %s2 = inlined_call_operand.vmem [shape: f32[1,128], index: 2, kind: input, shape index: {}]
  %s3 = inlined_call_operand.hbm [shape: f32[64,128], index: 3, kind: output, shape index: {}]
  %s4 = sld [smem:[#allocation0]]
  $region30: #{tpu_custom_call.1} parent=0
    _
  %s6 = ssub.s32 1, %s4
  %s7 = scalar_select 0, %s6, %s4
  $region1: #{tpu_custom_call.1} parent=0
    #allocation2 [shape = 'u8[16384]{0}', space=vmem, size = 0x4000, scoped, tag = 'input window, operand 0, single buffered']
    #allocation3 [shape = 's32[1]{0}', space=sflag, size = 0x4, scoped, tag = 'scoped memory for tpu_custom_call.1']
    #allocation4 [shape = 's32[1]{0}', space=sflag, size = 0x4, scoped, tag = 'scoped memory for tpu_custom_call.1']
    #allocation5 [shape = 'u8[32768]{0}', space=vmem, size = 0x8000, scoped, tag = 'input window, operand 1, single buffered']
    #allocation6 [shape = 's32[1]{0}', space=sflag, size = 0x4, scoped, tag = 'scoped memory for tpu_custom_call.1']
    #allocation7 [shape = 'u8[32768]{0}', space=vmem, size = 0x8000, scoped, tag = 'output window, operand 0, single buffered']
    %8 = vsyncpa [#allocation3], 0
    %9 = vsyncpa [#allocation6], 0
    %10 = vsyncpa [#allocation4], 0
    // Predicated region
    $region2: #{tpu_custom_call.1} parent=1 // pred_check
      _
    $region3: #{tpu_custom_call.1} parent=1 // pred_check_branch
      %12 = sbr.rel (0) target = $region5
    $region4: #{tpu_custom_call.1} parent=1 // pred_region
      %s14 = ssub.s32 512, 512
      %15 = vsyncadd [#allocation3], %s14
      %s16 = sshll.u32 [#allocation2], 4
      %s17 = int_to_ptr.vmem [resolvable:$true] %s16
      %22 = dma.hbm_to_vmem [thread:$0]  %s0, 512, %s17, [#allocation3], 64, 64, 4
    $region5: #{tpu_custom_call.1} parent=1 // pred_fallthru
      _
    // Predicated region
    $region6: #{tpu_custom_call.1} parent=1 // pred_check
      _
    $region7: #{tpu_custom_call.1} parent=1 // pred_check_branch
      %24 = sbr.rel (0) target = $region9
    $region8: #{tpu_custom_call.1} parent=1 // pred_region
      %s26 = ssub.s32 1024, 1024
      %27 = vsyncadd [#allocation6], %s26
      %s28 = sshll.u32 [#allocation5], 4
      %s29 = int_to_ptr.vmem [resolvable:$true] %s28
      %34 = dma.hbm_to_vmem [thread:$0]  %s1, 1024, %s29, [#allocation6], 64, 64, 4
    $region9: #{tpu_custom_call.1} parent=1 // pred_fallthru
      _
    // Predicated region
    $region10: #{tpu_custom_call.1} parent=1 // pred_check
      _
    $region11: #{tpu_custom_call.1} parent=1 // pred_check_branch
      %36 = sbr.rel (0) target = $region13
    $region12: #{tpu_custom_call.1} parent=1 // pred_region
      _
    $region13: #{tpu_custom_call.1} parent=1 // pred_fallthru
      _
    // Predicated region
    $region14: #{tpu_custom_call.1} parent=1 // pred_check
      _
    $region15: #{tpu_custom_call.1} parent=1 // pred_check_branch
      %38 = sbr.rel (0) target = $region17
    $region16: #{tpu_custom_call.1} parent=1 // pred_region
      %39 = dma.done [#allocation3], 512
    $region17: #{tpu_custom_call.1} parent=1 // pred_fallthru
      _
    // Predicated region
    $region18: #{tpu_custom_call.1} parent=1 // pred_check
      _
    $region19: #{tpu_custom_call.1} parent=1 // pred_check_branch
      %41 = sbr.rel (0) target = $region21
    $region20: #{tpu_custom_call.1} parent=1 // pred_region
      %42 = dma.done [#allocation6], 1024
    $region21: #{tpu_custom_call.1} parent=1 // pred_fallthru
      _
    %v44 = vld [vmem:[#allocation2] sm:$0xf]
    %v45 = vld [vmem:[#allocation2 + $0x4] sm:$0xf]
    %v46 = vld [vmem:[#allocation2 + $0x8] sm:$0xf]
    %v47 = vld [vmem:[#allocation2 + $0xc] sm:$0xf]
    %v48 = vld [vmem:[#allocation2 + $0x10] sm:$0xf]
    %v49 = vld [vmem:[#allocation2 + $0x14] sm:$0xf]
    %v50 = vld [vmem:[#allocation2 + $0x18] sm:$0xf]
    %v51 = vld [vmem:[#allocation2 + $0x1c] sm:$0xf]
    %v52 = vld [vmem:[#allocation5] sm:$0xf]
    %v53 = vld [vmem:[#allocation5 + $0x4] sm:$0xf]
    %v54 = vld [vmem:[#allocation5 + $0x8] sm:$0xf]
    %v55 = vld [vmem:[#allocation5 + $0xc] sm:$0xf]
    %v56 = vld [vmem:[#allocation5 + $0x10] sm:$0xf]
    %v57 = vld [vmem:[#allocation5 + $0x14] sm:$0xf]
    %v58 = vld [vmem:[#allocation5 + $0x18] sm:$0xf]
    %v59 = vld [vmem:[#allocation5 + $0x1c] sm:$0xf]
    %v60 = vld [vmem:[#allocation5 + $0x20] sm:$0xf]
    %v61 = vld [vmem:[#allocation5 + $0x24] sm:$0xf]
    %v62 = vld [vmem:[#allocation5 + $0x28] sm:$0xf]
    %v63 = vld [vmem:[#allocation5 + $0x2c] sm:$0xf]
    %v64 = vld [vmem:[#allocation5 + $0x30] sm:$0xf]
    %v65 = vld [vmem:[#allocation5 + $0x34] sm:$0xf]
    %v66 = vld [vmem:[#allocation5 + $0x38] sm:$0xf]
    %v67 = vld [vmem:[#allocation5 + $0x3c] sm:$0xf]
    %v68 = vld [vmem:[%s2] sm:$0x1]
    %v70 = vlaneseq
    %v71 = vshrl.u32 %v70, 7
    %v72 = vsub.s32 0, %v71
    %v73 = vrot.slane %v68, %v72
    %v83 = vunpack.c.l.b16 %v44
    %v84 = vunpack.c.l.b16 %v45
    %v85 = vunpack.c.l.b16 %v46
    %v86 = vunpack.c.l.b16 %v47
    %v87 = vunpack.c.l.b16 %v48
    %v88 = vunpack.c.l.b16 %v49
    %v89 = vunpack.c.l.b16 %v50
    %v90 = vunpack.c.l.b16 %v51
    %v91 = vpack.c.b16 %v84, %v83
    %v92 = vpack.c.b16 %v86, %v85
    %v93 = vpack.c.b16 %v88, %v87
    %v94 = vpack.c.b16 %v90, %v89
    %v115 = vunpack.c.l.b16 %v52
    %v116 = vunpack.c.l.b16 %v53
    %v117 = vunpack.c.l.b16 %v54
    %v118 = vunpack.c.l.b16 %v55
    %v119 = vunpack.c.l.b16 %v56
    %v120 = vunpack.c.l.b16 %v57
    %v121 = vunpack.c.l.b16 %v58
    %v122 = vunpack.c.l.b16 %v59
    %v123 = vunpack.c.l.b16 %v60
    %v124 = vunpack.c.l.b16 %v61
    %v125 = vunpack.c.l.b16 %v62
    %v126 = vunpack.c.l.b16 %v63
    %v127 = vunpack.c.l.b16 %v64
    %v128 = vunpack.c.l.b16 %v65
    %v129 = vunpack.c.l.b16 %v66
    %v130 = vunpack.c.l.b16 %v67
    %v131 = vpack.c.b16 %v116, %v115
    %v132 = vpack.c.b16 %v118, %v117
    %v133 = vpack.c.b16 %v120, %v119
    %v134 = vpack.c.b16 %v122, %v121
    %v135 = vpack.c.b16 %v124, %v123
    %v136 = vpack.c.b16 %v126, %v125
    %v137 = vpack.c.b16 %v128, %v127
    %v138 = vpack.c.b16 %v130, %v129
    %147 = vmatprep.subr.bf16.mxu0 0
    %148 = vmatpush1.bf16.msra.mxu0 %v138
    %149 = vmatprep.subr.bf16.mxu0 0
    %150 = vmatpush1.bf16.msra.mxu0 %v137
    %151 = vmatprep.subr.bf16.mxu0 0
    %152 = vmatpush1.bf16.msra.mxu0 %v136
    %153 = vmatprep.subr.bf16.mxu0 0
    %154 = vmatpush1.bf16.msra.mxu0 %v135
    %155 = vmatprep.subr.bf16.mxu0 0
    %156 = vmatpush1.bf16.msra.mxu0 %v134
    %157 = vmatprep.subr.bf16.mxu0 0
    %158 = vmatpush1.bf16.msra.mxu0 %v133
    %159 = vmatprep.subr.bf16.mxu0 0
    %160 = vmatpush1.bf16.msra.mxu0 %v132
    %161 = vmatprep.subr.bf16.mxu0 0
    %162 = vmatpush1.bf16.msra.mxu0 %v131
    %163 = vmatprep.subr.bf16.mxu0 0
    %164 = vmatpush2.bf16.msra.mxu0 0
    %165 = vmatprep.subr.bf16.mxu0 0
    %166 = vmatpush2.bf16.msra.mxu0 0
    %167 = vmatprep.subr.bf16.mxu0 0
    %168 = vmatpush2.bf16.msra.mxu0 0
    %169 = vmatprep.subr.bf16.mxu0 0
    %170 = vmatpush2.bf16.msra.mxu0 0
    %171 = vmatprep.subr.bf16.mxu0 0
    %172 = vmatpush2.bf16.msra.mxu0 0
    %173 = vmatprep.subr.bf16.mxu0 0
    %174 = vmatpush2.bf16.msra.mxu0 0
    %175 = vmatprep.subr.bf16.mxu0 0
    %176 = vmatpush2.bf16.msra.mxu0 0
    %177 = vmatprep.subr.bf16.mxu0 0
    %178 = vmatpush2.bf16.msra.mxu0 0
    %179 = vmatprep.mubr.bf16.mxu0 0
    %180 = vmatmul.mubr.bf16.gmra.mxu0 %v91
    %v181 = vpop.f32.mrf.mxu0
    %v182 = vadd.f32 %v73, %v181
    %v183 = vpop.f32.mrf.mxu0
    %v184 = vpop.f32.mrf.mxu0
    %v185 = vadd.f32 %v73, %v184
    %v186 = vpop.f32.mrf.mxu0
    %187 = vmatprep.mubr.bf16.mxu0 0
    %188 = vmatmul.mubr.bf16.gmra.mxu0 %v92
    %v189 = vpop.f32.mrf.mxu0
    %v190 = vadd.f32 %v73, %v189
    %v191 = vpop.f32.mrf.mxu0
    %v192 = vpop.f32.mrf.mxu0
    %v193 = vadd.f32 %v73, %v192
    %v194 = vpop.f32.mrf.mxu0
    %195 = vmatprep.mubr.bf16.mxu0 0
    %196 = vmatmul.mubr.bf16.gmra.mxu0 %v93
    %v197 = vpop.f32.mrf.mxu0
    %v198 = vadd.f32 %v73, %v197
    %v199 = vpop.f32.mrf.mxu0
    %v200 = vpop.f32.mrf.mxu0
    %v201 = vadd.f32 %v73, %v200
    %v202 = vpop.f32.mrf.mxu0
    %203 = vmatprep.mubr.bf16.mxu0 0
    %204 = vmatmul.mubr.bf16.gmra.mxu0 %v94
    %v205 = vpop.f32.mrf.mxu0
    %v206 = vadd.f32 %v73, %v205
    %v207 = vpop.f32.mrf.mxu0
    %v208 = vpop.f32.mrf.mxu0
    %v209 = vadd.f32 %v73, %v208
    %v210 = vpop.f32.mrf.mxu0
    %211 = vdwg.mxu0
    %212 = vst [vmem:[#allocation7] sm:$0xff] %v182
    %213 = vst [vmem:[#allocation7 + $0x8] sm:$0xff] %v185
    %214 = vst [vmem:[#allocation7 + $0x10] sm:$0xff] %v190
    %215 = vst [vmem:[#allocation7 + $0x18] sm:$0xff] %v193
    %216 = vst [vmem:[#allocation7 + $0x20] sm:$0xff] %v198
    %217 = vst [vmem:[#allocation7 + $0x28] sm:$0xff] %v201
    %218 = vst [vmem:[#allocation7 + $0x30] sm:$0xff] %v206
    %219 = vst [vmem:[#allocation7 + $0x38] sm:$0xff] %v209
    // Predicated region
    $region22: #{tpu_custom_call.1} parent=1 // pred_check
      _
    $region23: #{tpu_custom_call.1} parent=1 // pred_check_branch
      %221 = sbr.rel (0) target = $region25
    $region24: #{tpu_custom_call.1} parent=1 // pred_region
      %s223 = ssub.s32 1024, 1024
      %224 = vsyncadd [#allocation4], %s223
      %s225 = sshll.u32 [#allocation7], 4
      %s226 = int_to_ptr.vmem [resolvable:$true] %s225
      %231 = dma.vmem_to_hbm [thread:$0]  %s226, 1024, %s3, [#allocation4], 128, 128, 8
    $region25: #{tpu_custom_call.1} parent=1 // pred_fallthru
      _
    // Predicated region
    $region26: #{tpu_custom_call.1} parent=1 // pred_check
      _
    $region27: #{tpu_custom_call.1} parent=1 // pred_check_branch
      %233 = sbr.rel (0) target = $region29
    $region28: #{tpu_custom_call.1} parent=1 // pred_region
      %234 = dma.done [#allocation4], 1024
    $region29: #{tpu_custom_call.1} parent=1 // pred_fallthru
      _
    %235 = vsyncpa [#allocation3], 1
    %236 = vsyncpa [#allocation6], 1
    %237 = vsyncpa [#allocation4], 1

</llo_original>
